<compile_context>
chip_gen: v5e
topology: v5e:2x2
jax: 0.10.0
libtpu: 0.0.40
codegen_flags: <defaults>
</compile_context>

<pallas_src>
import jax
import jax.numpy as jnp
from jax.experimental import pallas as pl
from jax.experimental.pallas import tpu as pltpu


def _salience_kernel(idx_ref, w_ref, o_ref):
    # idx_ref : (TM, 4) int32, column t pre-offset by t*V (values in [tV,(t+1)V))
    # w_ref   : (4V, 4E) f32 block-diagonal fused embedding table
    # o_ref   : (TM, 4E) output block (lane-dense: 4E is a multiple of 128 here)
    TM = idx_ref.shape[0]
    V4 = w_ref.shape[0]

    idx = idx_ref[...]                                        # (TM, 4)
    iota = jax.lax.broadcasted_iota(jnp.int32, (TM, V4), 1)   # (TM, 4V)

    # Concatenated one-hot: per-table offsets are disjoint, so it is the OR of
    # four full-width one-hots (pure VPU work, no XLU transpose).
    hit = (iota == idx[:, 0:1]) | (iota == idx[:, 1:2]) | \
          (iota == idx[:, 2:3]) | (iota == idx[:, 3:4])
    onehot = hit.astype(w_ref.dtype)                          # (TM, 4V)

    # Exact f32 lookup: HIGHEST keeps the f32 weights un-truncated on the MXU
    # (DEFAULT would bf16-round the embeddings, ~4e-3 error).  The extra MXU
    # passes are trivially cheap at K = 4V.
    o_ref[...] = jnp.dot(onehot, w_ref[...],
                         preferred_element_type=jnp.float32,
                         precision=jax.lax.Precision.HIGHEST
                         ).astype(o_ref.dtype)                # (TM, 4E)


def pack_salience_weights(w_total, w_named, w_nominal, w_pronominal):
    """Build the (4V, 4E) block-diagonal fused table ONCE.

    Hoisted out of the per-forward-call path: it is 4x the raw table bytes and
    only changes when the parameters change, so rebuilding it (4 dynamic
    update-slices + HBM writes) on every call is wasted work.
    """
    V, E = w_total.shape
    w_bd = jnp.zeros((4 * V, 4 * E), dtype=jnp.float32)
    for t, w in enumerate((w_total, w_named, w_nominal, w_pronominal)):
        w_bd = w_bd.at[t * V:(t + 1) * V, t * E:(t + 1) * E].set(
            w.astype(jnp.float32))
    return w_bd


def _choose_tm(n_rows, e4):
    """Pick the row tile TM.

    - multiple of 8 (sublane constraint) and a divisor of n_rows (no padding /
      no extra output slice pass),
    - capped at 2048 and by a ~16 MiB double-buffered VMEM budget derived from
      4E (out: 2*TM*4E*4 B, idx lane-padded to (TM,128) i32: 2*TM*512 B) so the
      tile also fits v7x's smaller VMEM,
    - prefer grid >= 2 so v7x's two TensorCores both get work.
    """
    budget = 16 * 1024 * 1024
    per_row = 2 * (e4 * 4 + 128 * 4)           # out + lane-padded idx, x2 bufs
    tm_cap = max(8, min(2048, (budget // per_row) // 8 * 8))
    divisors = [tm for tm in range(8, min(n_rows, tm_cap) + 1, 8)
                if n_rows % tm == 0]
    if not divisors:
        return min(n_rows, tm_cap)
    multi_step = [tm for tm in divisors if n_rows // tm >= 2]
    return max(multi_step) if multi_step else max(divisors)


def salience_embedding(idx_total, idx_named, idx_nominal, idx_pronominal,
                       w_bd, vocab_size, out_dtype=jnp.float32):
    """Pallas SalienceEmbedding.forward.

    Returns (B, S, 4*E), concat order [total, named, nominal, pronominal].
    `w_bd` is the pre-built block-diagonal table from pack_salience_weights().
    `out_dtype` can be set to jnp.bfloat16 to halve output HBM traffic
    (matters most on v5e) if downstream tolerates it.
    """
    B, S = idx_total.shape
    V = vocab_size
    V4, E4 = w_bd.shape
    N = B * S

    # ---- wrapper-side layout plumbing (free / XLA-fused) -----------------
    # Pack the four index tensors into (N, 4).  Clamp to [0, V-1] first
    # (PyTorch nn.Embedding would raise on OOB; clamping keeps in-range
    # semantics identical and guarantees an index never selects another
    # table's rows after the +t*V offset), then add per-table offsets.
    idx = jnp.stack([idx_total, idx_named, idx_nominal, idx_pronominal],
                    axis=-1).reshape(N, 4).astype(jnp.int32)
    idx = jnp.clip(idx, 0, V - 1)
    idx = idx + (jnp.arange(4, dtype=jnp.int32) * V)[None, :]

    # Only pad rows when N is not already a multiple of 8; padding forces an
    # extra HBM pass over the output (out[:N] slice), so the common path
    # avoids it entirely.
    N_pad = (N + 7) // 8 * 8
    if N_pad > N:
        # Padded rows carry clamped idx=offsets -> real row-0 embeddings; they
        # are sliced off below, keep that invariant if this path changes.
        idx = jnp.pad(idx, ((0, N_pad - N), (0, 0)))

    TM = _choose_tm(N_pad, E4)
    grid = (N_pad // TM,)

    idx_spec = pl.BlockSpec((TM, 4), lambda i: (i, 0))
    # Constant index_map: fused table stays resident in VMEM across all steps.
    w_spec = pl.BlockSpec((V4, E4), lambda i: (0, 0))
    out_spec = pl.BlockSpec((TM, E4), lambda i: (i, 0))

    out = pl.pallas_call(
        _salience_kernel,
        out_shape=jax.ShapeDtypeStruct((N_pad, E4), out_dtype),
        grid_spec=pltpu.PrefetchScalarGridSpec(
            num_scalar_prefetch=0,
            grid=grid,
            in_specs=[idx_spec, w_spec],
            out_specs=out_spec,
        ),
        compiler_params=pltpu.CompilerParams(
            dimension_semantics=("parallel",)),
    )(idx, w_bd)

    if N_pad > N:
        out = out[:N]
    return out.reshape(B, S, E4)


if __name__ == "__main__":
    salience_vocab_size = 10
    salience_embedding_size = 32
    B, S = 2, 8

    key = jax.random.PRNGKey(0)
    k_wt, k_wna, k_wno, k_wpr, k_i = jax.random.split(key, 5)

    # nn.Embedding default init: N(0, 1)
    w_total = jax.random.normal(
        k_wt, (salience_vocab_size, salience_embedding_size), jnp.float32)
    w_named = jax.random.normal(
        k_wna, (salience_vocab_size, salience_embedding_size), jnp.float32)
    w_nominal = jax.random.normal(
        k_wno, (salience_vocab_size, salience_embedding_size), jnp.float32)
    w_pronominal = jax.random.normal(
        k_wpr, (salience_vocab_size, salience_embedding_size), jnp.float32)

    ki1, ki2, ki3, ki4 = jax.random.split(k_i, 4)
    idx_total = jax.random.randint(ki1, (B, S), 0, salience_vocab_size, jnp.int32)
    idx_named = jax.random.randint(ki2, (B, S), 0, salience_vocab_size, jnp.int32)
    idx_nominal = jax.random.randint(ki3, (B, S), 0, salience_vocab_size, jnp.int32)
    idx_pronominal = jax.random.randint(ki4, (B, S), 0, salience_vocab_size, jnp.int32)

    # Built once (module "init"), reused across forward calls.
    w_bd = pack_salience_weights(w_total, w_named, w_nominal, w_pronominal)

    out = salience_embedding(idx_total, idx_named, idx_nominal, idx_pronominal,
                             w_bd, salience_vocab_size)
    out = jax.block_until_ready(out)

    # Reference (plain JAX take-based embedding + concat) for correctness.
    ref = jnp.concatenate([
        jnp.take(w_total, idx_total, axis=0),
        jnp.take(w_named, idx_named, axis=0),
        jnp.take(w_nominal, idx_nominal, axis=0),
        jnp.take(w_pronominal, idx_pronominal, axis=0),
    ], axis=2)

    assert out.shape == (B, S, 4 * salience_embedding_size), out.shape
    assert jnp.allclose(out, ref, atol=1e-6), float(jnp.max(jnp.abs(out - ref)))
    print("KERNEL_OK")
</pallas_src>

<mosaic_0001>
module attributes {stable_mosaic.version = 11 : i64} {
  func.func @_salience_kernel(%arg0: i32, %arg1: memref<8x4xi32, #tpu.memory_space<vmem>>, %arg2: memref<40x128xf32, #tpu.memory_space<vmem>>, %arg3: memref<8x128xf32, #tpu.memory_space<vmem>>) attributes {dimension_semantics = [#tpu.dimension_semantics<parallel>], iteration_bounds = array<i64: 2>, scalar_prefetch = 0 : i64, scratch_operands = 0 : i64, tpu.core_type = #tpu.core_type<tc>, window_params = [{transform_indices = @transform_0, window_bounds = array<i64: 8, 4>}, {pipeline_mode = #tpu.pipeline_mode<synchronous>, transform_indices = @transform_1, window_bounds = array<i64: 40, 128>}, {transform_indices = @transform_2, window_bounds = array<i64: 8, 128>}]} {
    %c0 = arith.constant 0 : index
    %c0_0 = arith.constant 0 : index
    %0 = vector.load %arg1[%c0, %c0_0] : memref<8x4xi32, #tpu.memory_space<vmem>>, vector<8x4xi32>
    %1 = tpu.iota {dimensions = array<i32: 1>} : vector<8x40xi32>
    %2 = vector.extract_strided_slice %0 {offsets = [0, 0], sizes = [8, 1], strides = [1, 1]} : vector<8x4xi32> to vector<8x1xi32>
    %3 = vector.broadcast %2 : vector<8x1xi32> to vector<8x40xi32>
    %4 = arith.cmpi eq, %1, %3 : vector<8x40xi32>
    %5 = vector.extract_strided_slice %0 {offsets = [0, 1], sizes = [8, 1], strides = [1, 1]} : vector<8x4xi32> to vector<8x1xi32>
    %6 = vector.broadcast %5 : vector<8x1xi32> to vector<8x40xi32>
    %7 = arith.cmpi eq, %1, %6 : vector<8x40xi32>
    %8 = arith.ori %4, %7 : vector<8x40xi1>
    %9 = vector.extract_strided_slice %0 {offsets = [0, 2], sizes = [8, 1], strides = [1, 1]} : vector<8x4xi32> to vector<8x1xi32>
    %10 = vector.broadcast %9 : vector<8x1xi32> to vector<8x40xi32>
    %11 = arith.cmpi eq, %1, %10 : vector<8x40xi32>
    %12 = arith.ori %8, %11 : vector<8x40xi1>
    %13 = vector.extract_strided_slice %0 {offsets = [0, 3], sizes = [8, 1], strides = [1, 1]} : vector<8x4xi32> to vector<8x1xi32>
    %14 = vector.broadcast %13 : vector<8x1xi32> to vector<8x40xi32>
    %15 = arith.cmpi eq, %1, %14 : vector<8x40xi32>
    %16 = arith.ori %12, %15 : vector<8x40xi1>
    %17 = arith.extui %16 : vector<8x40xi1> to vector<8x40xi32>
    %18 = arith.sitofp %17 : vector<8x40xi32> to vector<8x40xf32>
    %c0_1 = arith.constant 0 : index
    %c0_2 = arith.constant 0 : index
    %19 = vector.load %arg2[%c0_1, %c0_2] : memref<40x128xf32, #tpu.memory_space<vmem>>, vector<40x128xf32>
    %cst = arith.constant dense<0.000000e+00> : vector<8x128xf32>
    %20 = tpu.matmul %18, %19, %cst {dimension_numbers = #tpu.dot_dimension_numbers<[1], [0], [0], [1], [0, 0, 1, 1], [], []>, precision = #tpu.contract_precision<fp32>} : vector<8x40xf32>, vector<40x128xf32>, vector<8x128xf32> -> vector<8x128xf32>
    %c0_3 = arith.constant 0 : index
    %c0_4 = arith.constant 0 : index
    %21 = vector.load %arg3[%c0_3, %c0_4] : memref<8x128xf32, #tpu.memory_space<vmem>>, vector<8x128xf32>
    tpu.vector_store %arg3[%c0_3, %c0_4], %20 {strides = array<i32>} : memref<8x128xf32, #tpu.memory_space<vmem>>, vector<8x128xf32>,
    return
  }
  func.func @transform_0(%arg0: i32) -> (i32, i32) {
    %c0_i32 = arith.constant 0 : i32
    %c0_i32_0 = arith.constant 0 : i32
    return %arg0, %c0_i32 : i32, i32
  }
  func.func @transform_1(%arg0: i32) -> (i32, i32) {
    %c0_i32 = arith.constant 0 : i32
    %c0_i32_0 = arith.constant 0 : i32
    %c0_i32_1 = arith.constant 0 : i32
    return %c0_i32, %c0_i32_0 : i32, i32
  }
  func.func @transform_2(%arg0: i32) -> (i32, i32) {
    %c0_i32 = arith.constant 0 : i32
    %c0_i32_0 = arith.constant 0 : i32
    return %arg0, %c0_i32 : i32, i32
  }
}

</mosaic_0001>

<llo_original>
// kernel: tpu_custom_call.1
$region0: #{tpu_custom_call.1}
  #allocation0 [shape = 'u32[]', space=smem, size = 0x4, offset = 0x4, fixed_abs, tag = 'smem constant byte address 0x4 - core index']
  #allocation1 [shape = 'u32[72,128]{1,0:T(1,128)}', space=vmem, size = 0x9000, scoped, tag = 'internal scratch']
  %s0 = inlined_call_operand.vmem [shape: s32[16,4], index: 0, kind: input, shape index: {}]
  %s1 = inlined_call_operand.hbm [shape: f32[40,128], index: 1, kind: input, shape index: {}]
  %s2 = inlined_call_operand.hbm [shape: f32[16,128], index: 2, kind: output, shape index: {}]
  %s3 = sld [smem:[#allocation0]]
  $region45: #{tpu_custom_call.1} parent=0
    _
  %s5 = ssub.s32 1, %s3
  %s6 = scalar_select 0, %s5, %s3
  $region1: #{tpu_custom_call.1} parent=0
    #allocation2 [shape = 'u8[20480]{0}', space=vmem, size = 0x5000, scoped, tag = 'input window, operand 1, single buffered']
    #allocation3 [shape = 's32[2]{0}', space=sflag, size = 0x8, scoped, tag = 'scoped memory for tpu_custom_call.1']
    #allocation4 [shape = 's32[2]{0}', space=sflag, size = 0x8, scoped, tag = 'scoped memory for tpu_custom_call.1']
    #allocation5 [shape = 'u8[8192]{0}', space=vmem, size = 0x2000, scoped, tag = 'output window, operand 0']
    %7 = vsyncpa [#allocation3], 0
    %8 = vsyncpa [#allocation4], 0
    %s9 = scalar_lea.sflag [#allocation4], 1
    %10 = vsyncpa %s9, 0
    loop: start=0, step=1, limit=4
    $region2: #{tpu_custom_call.1} parent=1 // loop_pre_header
      _
    $region3: #{tpu_custom_call.1} parent=1 // loop_header
      %s12 = sphi 0, %s16
      %p13 = scmp.ge.s32.totalorder %s12, 4
      %s22 = sphi 0, %s24
      %s25 = sphi 0, %s22
      %s26 = sphi 0, %s25
      %s42 = sphi 0, %s26
      %s46 = sphi 0, %s46
      %s48 = sphi 0, %s46
      %s49 = sphi 0, %s48
      %s63 = sphi 0, %s49
      %s69 = sphi 0, %s71
      %s72 = sphi 0, %s69
      %s73 = sphi 0, %s72
      %s89 = sphi 0, %s73
    $region4: #{tpu_custom_call.1} parent=1 // loop_header_branch
      %15 = sbr.rel (%p13) target = $region8
    $region5: #{tpu_custom_call.1} parent=1 // loop_body
      %s17 = ssub.s32 %s12, 1
      %s18 = ssub.s32 %s12, 2
      %s19 = sadd.s32 %s12, 1
      %s20 = ssub.s32 %s12, %s19
      %p21 = scmp.eq.s32.totalorder %s20, 0
      %s23 = sadd.s32 %s22, 1
      %s24 = scalar_select %p21, %s22, %s23
      %p27 = pneg %p21
      %p28 = scmp.eq.s32.totalorder %s12, 1
      %p29 = por %p27, %p28
      %p30 = scmp.ne.s32.totalorder %s22, %s25
      %p31 = scmp.eq.s32.totalorder %s12, 0
      %p32 = por %p30, %p31
      %p33 = scmp.ne.s32.totalorder %s22, %s25
      %p34 = scmp.eq.s32.totalorder %s17, 1
      %p35 = por %p33, %p34
      %p36 = scmp.ne.s32.totalorder %s25, %s26
      %p37 = scmp.eq.s32.totalorder %s17, 0
      %p38 = por %p36, %p37
      %p39 = scmp.ne.s32.totalorder %s25, %s26
      %p40 = scmp.eq.s32.totalorder %s18, 1
      %p41 = por %p39, %p40
      %p43 = scmp.ne.s32.totalorder %s26, %s42
      %p44 = scmp.eq.s32.totalorder %s18, 0
      %p45 = por %p43, %p44
      %s47 = sadd.s32 %s46, 1
      %p50 = scmp.eq.s32.totalorder %s12, 1
      %p51 = scmp.ne.s32.totalorder %s46, %s48
      %p52 = scmp.eq.s32.totalorder %s12, 0
      %p53 = por %p51, %p52
      %p54 = scmp.ne.s32.totalorder %s46, %s48
      %p55 = scmp.eq.s32.totalorder %s17, 1
      %p56 = por %p54, %p55
      %p57 = scmp.ne.s32.totalorder %s48, %s49
      %p58 = scmp.eq.s32.totalorder %s17, 0
      %p59 = por %p57, %p58
      %p60 = scmp.ne.s32.totalorder %s48, %s49
      %p61 = scmp.eq.s32.totalorder %s18, 1
      %p62 = por %p60, %p61
      %p64 = scmp.ne.s32.totalorder %s49, %s63
      %p65 = scmp.eq.s32.totalorder %s18, 0
      %p66 = por %p64, %p65
      %s67 = ssub.s32 %s12, %s19
      %p68 = scmp.eq.s32.totalorder %s67, 0
      %s70 = sadd.s32 %s69, 1
      %s71 = scalar_select %p68, %s69, %s70
      %p74 = pneg %p68
      %p75 = scmp.eq.s32.totalorder %s12, 1
      %p76 = por %p74, %p75
      %p77 = scmp.ne.s32.totalorder %s69, %s72
      %p78 = scmp.eq.s32.totalorder %s12, 0
      %p79 = por %p77, %p78
      %p80 = scmp.ne.s32.totalorder %s69, %s72
      %p81 = scmp.eq.s32.totalorder %s17, 1
      %p82 = por %p80, %p81
      %p83 = scmp.ne.s32.totalorder %s72, %s73
      %p84 = scmp.eq.s32.totalorder %s17, 0
      %p85 = por %p83, %p84
      %p86 = scmp.ne.s32.totalorder %s72, %s73
      %p87 = scmp.eq.s32.totalorder %s18, 1
      %p88 = por %p86, %p87
      %p90 = scmp.ne.s32.totalorder %s73, %s89
      %p91 = scmp.eq.s32.totalorder %s18, 0
      %p92 = por %p90, %p91
      %p93 = scmp.le.s32.totalorder 1, %s12
      %p94 = scmp.lt.s32.totalorder %s12, 3
      %p95 = pnand %p93, %p94
      %p96 = pneg %p95
      // Predicated region
      $region9: #{tpu_custom_call.1} parent=5 // pred_check
        _
      $region10: #{tpu_custom_call.1} parent=5 // pred_check_branch
        %98 = sbr.rel (%p95) target = $region12
      $region11: #{tpu_custom_call.1} parent=5 // pred_region
        %s99 = ssub.s32 %s12, 1
        // Predicated region
        $region13: #{tpu_custom_call.1} parent=11 // pred_check
          %p100 = pneg %p59
        $region14: #{tpu_custom_call.1} parent=11 // pred_check_branch
          %102 = sbr.rel (%p100) target = $region16
        $region15: #{tpu_custom_call.1} parent=11 // pred_region
          %104 = vsyncadd [#allocation3], 0
          %s105 = sshll.u32 %s1, 4
          %s106 = int_to_ptr.hbm [resolvable:$true] %s105
          %s107 = sshll.u32 [#allocation2], 4
          %s108 = int_to_ptr.vmem [resolvable:$true] %s107
          %113 = dma.hbm_to_vmem [thread:$0]  %s106, 640, %s108, [#allocation3], 128, 128, 8
        $region16: #{tpu_custom_call.1} parent=11 // pred_fallthru
          _
      $region12: #{tpu_custom_call.1} parent=5 // pred_fallthru
        _
      %p114 = scmp.lt.s32.totalorder %s12, 2
      // Predicated region
      $region17: #{tpu_custom_call.1} parent=5 // pred_check
        %p115 = pneg %p114
      $region18: #{tpu_custom_call.1} parent=5 // pred_check_branch
        %117 = sbr.rel (%p115) target = $region20
      $region19: #{tpu_custom_call.1} parent=5 // pred_region
        // Predicated region
        $region21: #{tpu_custom_call.1} parent=19 // pred_check
          %p118 = pneg %p32
        $region22: #{tpu_custom_call.1} parent=19 // pred_check_branch
          %120 = sbr.rel (%p118) target = $region24
        $region23: #{tpu_custom_call.1} parent=19 // pred_region
          %p121 = scmp.lt.s32.totalorder %s12, 1
          %s122 = scalar_select %p121, %s12, 1
          %s123 = smul.addr %s122, 8
          %s124 = scalar_lea.vmem %s0, %s123
        $region24: #{tpu_custom_call.1} parent=19 // pred_fallthru
          _
      $region20: #{tpu_custom_call.1} parent=5 // pred_fallthru
        _
      %p125 = scmp.le.s32.totalorder 1, %s12
      %p126 = scmp.lt.s32.totalorder %s12, 3
      %p127 = pnand %p125, %p126
      %p128 = pneg %p127
      // Predicated region
      $region25: #{tpu_custom_call.1} parent=5 // pred_check
        _
      $region26: #{tpu_custom_call.1} parent=5 // pred_check_branch
        %130 = sbr.rel (%p127) target = $region28
      $region27: #{tpu_custom_call.1} parent=5 // pred_region
        %s131 = ssub.s32 %s12, 1
        // Predicated region
        $region29: #{tpu_custom_call.1} parent=27 // pred_check
          %p132 = pneg %p59
        $region30: #{tpu_custom_call.1} parent=27 // pred_check_branch
          %134 = sbr.rel (%p132) target = $region32
        $region31: #{tpu_custom_call.1} parent=27 // pred_region
          %136 = dma.done [#allocation3], 640
        $region32: #{tpu_custom_call.1} parent=27 // pred_fallthru
          _
        %p137 = scmp.lt.s32.totalorder %s17, 1
        %s138 = scalar_select %p137, %s17, 1
        %s139 = smul.addr %s138, 8
        %s140 = scalar_lea.vmem %s0, %s139
        %p141 = pneg %p38
        %p142 = pneg %p35
        %p143 = pneg %p59
        %p144 = pneg %p56
        %p145 = pneg %p85
        %p146 = pneg %p82
        %s147 = sand.u32 %s72, 1
        %s148 = scalar_lea.sflag [#allocation4], %s147
        %s149 = sand.u32 %s72, 1
        %s150 = smul.addr %s149, 8
        %s151 = scalar_lea.vmem [#allocation5], %s150
        %p152 = scmp.lt.s32.totalorder %s17, 1
        %s153 = scalar_select %p152, %s17, 1
        %s154 = smul.addr %s153, 8
        %s155 = scalar_lea.vmem %s0, %s154
        %v156 = vld [vmem:[%s155] sm:$0xff]
        %v157 = vlaneseq
        %v158 = vand.u32 %v157, 127
        %159 = vset.pattern.permute.xlu0 0
        %160 = vperm.xlu0 %159, %v156
        %v161 = vpop.permute.xlu0 %160
        %vm162 = vcmp.eq.s32.totalorder %v158, %v161
        %163 = vset.pattern.permute.xlu0 1
        %164 = vperm.xlu0 %163, %v156
        %v165 = vpop.permute.xlu0 %164
        %vm166 = vcmp.eq.s32.totalorder %v158, %v165
        %vm167 = vmor %vm162, %vm166
        %168 = vset.pattern.permute.xlu0 2
        %169 = vperm.xlu0 %168, %v156
        %v170 = vpop.permute.xlu0 %169
        %vm171 = vcmp.eq.s32.totalorder %v158, %v170
        %vm172 = vmor %vm167, %vm171
        %173 = vset.pattern.permute.xlu0 3
        %174 = vperm.xlu0 %173, %v156
        %v175 = vpop.permute.xlu0 %174
        %vm176 = vcmp.eq.s32.totalorder %v158, %v175
        %vm177 = vmor %vm172, %vm176
        %v178 = vsel %vm177, 1, 0
        %v179 = vcvt.s32.f32 %v178
        %v180 = vld [vmem:[#allocation2] sm:$0xff]
        %v181 = vld [vmem:[#allocation2 + $0x8] sm:$0xff]
        %v182 = vld [vmem:[#allocation2 + $0x10] sm:$0xff]
        %v183 = vld [vmem:[#allocation2 + $0x18] sm:$0xff]
        %v184 = vld [vmem:[#allocation2 + $0x20] sm:$0xff]
        %vm185 = vcmask 326656
        %v187 = vsel %vm185, %v179, 0
        %189 = vmatpush.msra.mxu0 0.0
        %190 = vmatpush.msra.mxu0 0.0
        %191 = vmatpush.msra.mxu0 0.0
        %192 = vmatpush.msra.mxu0 0.0
        %193 = vmatpush.msra.mxu0 0.0
        %194 = vmatpush.msra.mxu0 0.0
        %195 = vmatpush.msra.mxu0 0.0
        %196 = vmatpush.msra.mxu0 0.0
        %197 = vmatpush.msra.mxu0 0.0
        %198 = vmatpush.msra.mxu0 0.0
        %199 = vmatpush.msra.mxu0 0.0
        %v200 = vand.u32 %v184, 4294901760
        %201 = vmatpush.msra.mxu0 %v200
        %v202 = vand.u32 %v183, 4294901760
        %203 = vmatpush.msra.mxu0 %v202
        %v204 = vand.u32 %v182, 4294901760
        %205 = vmatpush.msra.mxu0 %v204
        %v206 = vand.u32 %v181, 4294901760
        %207 = vmatpush.msra.mxu0 %v206
        %v208 = vand.u32 %v180, 4294901760
        %209 = vmatpush.msra.mxu0 %v208
        %v210 = vand.u32 %v187, 4294901760
        %v211 = vsub.f32 %v187, %v210
        %v212 = vand.u32 %v211, 4294901760
        %v213 = vsub.f32 %v211, %v212
        %v214 = vand.u32 %v213, 4294901760
        %215 = vmatmul.f32.gmra.mxu0 %v214
        %v216 = vpop.f32.mrf.mxu0
        %v217 = vadd.f32 0.0, %v216
        %218 = vdwg.mxu0
        %219 = vmatpush.msra.mxu0 0.0
        %220 = vmatpush.msra.mxu0 0.0
        %221 = vmatpush.msra.mxu0 0.0
        %222 = vmatpush.msra.mxu0 0.0
        %223 = vmatpush.msra.mxu0 0.0
        %224 = vmatpush.msra.mxu0 0.0
        %225 = vmatpush.msra.mxu0 0.0
        %226 = vmatpush.msra.mxu0 0.0
        %227 = vmatpush.msra.mxu0 0.0
        %228 = vmatpush.msra.mxu0 0.0
        %229 = vmatpush.msra.mxu0 0.0
        %v230 = vand.u32 %v184, 4294901760
        %v231 = vsub.f32 %v184, %v230
        %v232 = vand.u32 %v231, 4294901760
        %v233 = vsub.f32 %v231, %v232
        %v234 = vand.u32 %v233, 4294901760
        %235 = vmatpush.msra.mxu0 %v234
        %v236 = vand.u32 %v183, 4294901760
        %v237 = vsub.f32 %v183, %v236
        %v238 = vand.u32 %v237, 4294901760
        %v239 = vsub.f32 %v237, %v238
        %v240 = vand.u32 %v239, 4294901760
        %241 = vmatpush.msra.mxu0 %v240
        %v242 = vand.u32 %v182, 4294901760
        %v243 = vsub.f32 %v182, %v242
        %v244 = vand.u32 %v243, 4294901760
        %v245 = vsub.f32 %v243, %v244
        %v246 = vand.u32 %v245, 4294901760
        %247 = vmatpush.msra.mxu0 %v246
        %v248 = vand.u32 %v181, 4294901760
        %v249 = vsub.f32 %v181, %v248
        %v250 = vand.u32 %v249, 4294901760
        %v251 = vsub.f32 %v249, %v250
        %v252 = vand.u32 %v251, 4294901760
        %253 = vmatpush.msra.mxu0 %v252
        %v254 = vand.u32 %v180, 4294901760
        %v255 = vsub.f32 %v180, %v254
        %v256 = vand.u32 %v255, 4294901760
        %v257 = vsub.f32 %v255, %v256
        %v258 = vand.u32 %v257, 4294901760
        %259 = vmatpush.msra.mxu0 %v258
        %v260 = vand.u32 %v187, 4294901760
        %261 = vmatmul.f32.gmra.mxu0 %v260
        %v262 = vpop.f32.mrf.mxu0
        %v263 = vadd.f32 %v217, %v262
        %264 = vdwg.mxu0
        %265 = vmatpush.msra.mxu0 0.0
        %266 = vmatpush.msra.mxu0 0.0
        %267 = vmatpush.msra.mxu0 0.0
        %268 = vmatpush.msra.mxu0 0.0
        %269 = vmatpush.msra.mxu0 0.0
        %270 = vmatpush.msra.mxu0 0.0
        %271 = vmatpush.msra.mxu0 0.0
        %272 = vmatpush.msra.mxu0 0.0
        %273 = vmatpush.msra.mxu0 0.0
        %274 = vmatpush.msra.mxu0 0.0
        %275 = vmatpush.msra.mxu0 0.0
        %v276 = vand.u32 %v184, 4294901760
        %v277 = vsub.f32 %v184, %v276
        %278 = vmatpush.msra.mxu0 %v277
        %v279 = vand.u32 %v183, 4294901760
        %v280 = vsub.f32 %v183, %v279
        %281 = vmatpush.msra.mxu0 %v280
        %v282 = vand.u32 %v182, 4294901760
        %v283 = vsub.f32 %v182, %v282
        %284 = vmatpush.msra.mxu0 %v283
        %v285 = vand.u32 %v181, 4294901760
        %v286 = vsub.f32 %v181, %v285
        %287 = vmatpush.msra.mxu0 %v286
        %v288 = vand.u32 %v180, 4294901760
        %v289 = vsub.f32 %v180, %v288
        %290 = vmatpush.msra.mxu0 %v289
        %v291 = vand.u32 %v187, 4294901760
        %v292 = vsub.f32 %v187, %v291
        %293 = vmatmul.f32.gmra.mxu0 %v292
        %v294 = vpop.f32.mrf.mxu0
        %v295 = vadd.f32 %v263, %v294
        %296 = vdwg.mxu0
        %297 = vmatpush.msra.mxu0 0.0
        %298 = vmatpush.msra.mxu0 0.0
        %299 = vmatpush.msra.mxu0 0.0
        %300 = vmatpush.msra.mxu0 0.0
        %301 = vmatpush.msra.mxu0 0.0
        %302 = vmatpush.msra.mxu0 0.0
        %303 = vmatpush.msra.mxu0 0.0
        %304 = vmatpush.msra.mxu0 0.0
        %305 = vmatpush.msra.mxu0 0.0
        %306 = vmatpush.msra.mxu0 0.0
        %307 = vmatpush.msra.mxu0 0.0
        %v308 = vand.u32 %v184, 4294901760
        %309 = vmatpush.msra.mxu0 %v308
        %v310 = vand.u32 %v183, 4294901760
        %311 = vmatpush.msra.mxu0 %v310
        %v312 = vand.u32 %v182, 4294901760
        %313 = vmatpush.msra.mxu0 %v312
        %v314 = vand.u32 %v181, 4294901760
        %315 = vmatpush.msra.mxu0 %v314
        %v316 = vand.u32 %v180, 4294901760
        %317 = vmatpush.msra.mxu0 %v316
        %v318 = vand.u32 %v187, 4294901760
        %v319 = vsub.f32 %v187, %v318
        %v320 = vand.u32 %v319, 4294901760
        %321 = vmatmul.f32.gmra.mxu0 %v320
        %v322 = vpop.f32.mrf.mxu0
        %v323 = vadd.f32 %v295, %v322
        %324 = vdwg.mxu0
        %325 = vmatpush.msra.mxu0 0.0
        %326 = vmatpush.msra.mxu0 0.0
        %327 = vmatpush.msra.mxu0 0.0
        %328 = vmatpush.msra.mxu0 0.0
        %329 = vmatpush.msra.mxu0 0.0
        %330 = vmatpush.msra.mxu0 0.0
        %331 = vmatpush.msra.mxu0 0.0
        %332 = vmatpush.msra.mxu0 0.0
        %333 = vmatpush.msra.mxu0 0.0
        %334 = vmatpush.msra.mxu0 0.0
        %335 = vmatpush.msra.mxu0 0.0
        %v336 = vand.u32 %v184, 4294901760
        %v337 = vsub.f32 %v184, %v336
        %v338 = vand.u32 %v337, 4294901760
        %339 = vmatpush.msra.mxu0 %v338
        %v340 = vand.u32 %v183, 4294901760
        %v341 = vsub.f32 %v183, %v340
        %v342 = vand.u32 %v341, 4294901760
        %343 = vmatpush.msra.mxu0 %v342
        %v344 = vand.u32 %v182, 4294901760
        %v345 = vsub.f32 %v182, %v344
        %v346 = vand.u32 %v345, 4294901760
        %347 = vmatpush.msra.mxu0 %v346
        %v348 = vand.u32 %v181, 4294901760
        %v349 = vsub.f32 %v181, %v348
        %v350 = vand.u32 %v349, 4294901760
        %351 = vmatpush.msra.mxu0 %v350
        %v352 = vand.u32 %v180, 4294901760
        %v353 = vsub.f32 %v180, %v352
        %v354 = vand.u32 %v353, 4294901760
        %355 = vmatpush.msra.mxu0 %v354
        %v356 = vand.u32 %v187, 4294901760
        %357 = vmatmul.f32.gmra.mxu0 %v356
        %v358 = vpop.f32.mrf.mxu0
        %v359 = vadd.f32 %v323, %v358
        %360 = vdwg.mxu0
        %361 = vmatpush.msra.mxu0 0.0
        %362 = vmatpush.msra.mxu0 0.0
        %363 = vmatpush.msra.mxu0 0.0
        %364 = vmatpush.msra.mxu0 0.0
        %365 = vmatpush.msra.mxu0 0.0
        %366 = vmatpush.msra.mxu0 0.0
        %367 = vmatpush.msra.mxu0 0.0
        %368 = vmatpush.msra.mxu0 0.0
        %369 = vmatpush.msra.mxu0 0.0
        %370 = vmatpush.msra.mxu0 0.0
        %371 = vmatpush.msra.mxu0 0.0
        %v372 = vand.u32 %v184, 4294901760
        %373 = vmatpush.msra.mxu0 %v372
        %v374 = vand.u32 %v183, 4294901760
        %375 = vmatpush.msra.mxu0 %v374
        %v376 = vand.u32 %v182, 4294901760
        %377 = vmatpush.msra.mxu0 %v376
        %v378 = vand.u32 %v181, 4294901760
        %379 = vmatpush.msra.mxu0 %v378
        %v380 = vand.u32 %v180, 4294901760
        %381 = vmatpush.msra.mxu0 %v380
        %v382 = vand.u32 %v187, 4294901760
        %383 = vmatmul.f32.gmra.mxu0 %v382
        %v384 = vpop.f32.mrf.mxu0
        %v385 = vadd.f32 %v359, %v384
        %386 = vdwg.mxu0
        %387 = vst [vmem:[%s151] sm:$0xff] %v385
        %s388 = sand.u32 %s72, 1
        %s389 = scalar_lea.sflag [#allocation4], %s388
        %s390 = sand.u32 %s72, 1
        %s391 = smul.addr %s390, 8
        %s392 = scalar_lea.vmem [#allocation5], %s391
        // Predicated region
        $region33: #{tpu_custom_call.1} parent=27 // pred_check
          %p393 = pneg %p82
        $region34: #{tpu_custom_call.1} parent=27 // pred_check_branch
          %395 = sbr.rel (%p393) target = $region36
        $region35: #{tpu_custom_call.1} parent=27 // pred_region
          %397 = vsyncadd %s389, 0
          %s398 = smul.addr %s17, 8
          %s399 = scalar_lea.hbm %s2, %s398
          %s401 = sshll.u32 %s392, 4
          %s402 = int_to_ptr.vmem [resolvable:$true] %s401
          %s403 = sshll.u32 %s399, 4
          %s404 = int_to_ptr.hbm [resolvable:$true] %s403
          %406 = dma.vmem_to_hbm [thread:$0]  %s402, 128, %s404, %s389
        $region36: #{tpu_custom_call.1} parent=27 // pred_fallthru
          _
      $region28: #{tpu_custom_call.1} parent=5 // pred_fallthru
        _
      %p407 = scmp.le.s32.totalorder 2, %s12
      // Predicated region
      $region37: #{tpu_custom_call.1} parent=5 // pred_check
        %p408 = pneg %p407
      $region38: #{tpu_custom_call.1} parent=5 // pred_check_branch
        %410 = sbr.rel (%p408) target = $region40
      $region39: #{tpu_custom_call.1} parent=5 // pred_region
        %s411 = ssub.s32 %s12, 2
        // Predicated region
        $region41: #{tpu_custom_call.1} parent=39 // pred_check
          %p412 = pneg %p88
        $region42: #{tpu_custom_call.1} parent=39 // pred_check_branch
          %414 = sbr.rel (%p412) target = $region44
        $region43: #{tpu_custom_call.1} parent=39 // pred_region
          %s415 = sand.u32 %s73, 1
          %s416 = scalar_lea.sflag [#allocation4], %s415
          %s417 = sand.u32 %s73, 1
          %s418 = smul.addr %s417, 8
          %s419 = scalar_lea.vmem [#allocation5], %s418
          %421 = dma.done %s416, 128
        $region44: #{tpu_custom_call.1} parent=39 // pred_fallthru
          _
      $region40: #{tpu_custom_call.1} parent=5 // pred_fallthru
        _
    $region6: #{tpu_custom_call.1} parent=1 // loop_footer
      %s16 = sadd.s32 1, %s12
    $region7: #{tpu_custom_call.1} parent=1 // loop_footer_branch
      %11 = sbr.rel target = $region3
    $region8: #{tpu_custom_call.1} parent=1 // loop_exit
      _
    %422 = vsyncpa [#allocation3], 1
    %s423 = scalar_lea.sflag [#allocation3], 1
    %424 = vsyncpa %s423, 1
    %425 = vsyncpa [#allocation4], 1
    %s426 = scalar_lea.sflag [#allocation4], 1
    %427 = vsyncpa %s426, 1

</llo_original>
